<compile_context>
chip_gen: v7x
topology: tpu7x:2x2x1
jax: 0.10.0
libtpu: 0.0.40
codegen_flags: <defaults>
</compile_context>

<pallas_src>
import functools

import jax
import jax.numpy as jnp
from jax.experimental import pallas as pl
from jax.experimental.pallas import tpu as pltpu


def _round_up(n: int, m: int) -> int:
    return ((n + m - 1) // m) * m


def autoencoder_kernel(x_ref, w1_ref, b1_ref, w2_ref, b2_ref, out_ref):
    # encoder: latent = sigmoid(x @ W1 + b1)           (tm, F) @ (F, Pp) -> (tm, Pp)
    h = jnp.dot(x_ref[...], w1_ref[...],
                preferred_element_type=jnp.float32,
                precision=jax.lax.Precision.HIGHEST)
    latent = jax.nn.sigmoid(h + b1_ref[...])

    # decoder: yhat = latent @ W2 + b2 (no activation) (tm, Pp) @ (Pp, F) -> (tm, F)
    y = jnp.dot(latent, w2_ref[...],
                preferred_element_type=jnp.float32,
                precision=jax.lax.Precision.HIGHEST)
    out_ref[...] = (y + b2_ref[...]).astype(out_ref.dtype)


@functools.partial(jax.jit, static_argnames=("tm",))
def autoencoder_forward(x, w1, b1, w2, b2, *, tm=2048):
    """x: (B, F), w1: (F, P), b1: (1, P), w2: (P, F), b2: (1, F) -> (B, F)."""
    B, F = x.shape
    P = w1.shape[1]
    Pp = _round_up(P, 128)          # pad only the tiny hidden dim to a lane multiple

    # Batch tile: multiple of 8 sublanes, no larger than (rounded-up) B.
    tm = min(tm, _round_up(B, 8))
    # Guarantee >= 2 grid steps when possible so the batch axis shards across both
    # TensorCores on v7x (harmless on single-TC v5e/v6e).
    if B > 8 and pl.cdiv(B, tm) < 2:
        tm = max(8, _round_up(pl.cdiv(B, 2), 8))
    grid = (pl.cdiv(B, tm),)        # ragged last block is handled by Pallas

    f32 = jnp.float32
    x = x.astype(f32)
    w1_p = jnp.zeros((F, Pp), f32).at[:, :P].set(w1.astype(f32))
    b1_p = jnp.zeros((1, Pp), f32).at[:, :P].set(b1.astype(f32))
    # Zero pad-rows of w2 neutralize the padded latent lanes (sigmoid(0) = 0.5).
    w2_p = jnp.zeros((Pp, F), f32).at[:P, :].set(w2.astype(f32))
    b2_p = b2.astype(f32).reshape(1, F)

    out = pl.pallas_call(
        autoencoder_kernel,
        out_shape=jax.ShapeDtypeStruct((B, F), f32),
        grid=grid,
        in_specs=[
            pl.BlockSpec((tm, F), lambda i: (i, 0)),   # x tile, streamed per grid step
            pl.BlockSpec((F, Pp), lambda i: (0, 0)),   # w1, VMEM-resident
            pl.BlockSpec((1, Pp), lambda i: (0, 0)),   # b1, VMEM-resident
            pl.BlockSpec((Pp, F), lambda i: (0, 0)),   # w2, VMEM-resident
            pl.BlockSpec((1, F), lambda i: (0, 0)),    # b2, VMEM-resident
        ],
        out_specs=pl.BlockSpec((tm, F), lambda i: (i, 0)),
        compiler_params=pltpu.CompilerParams(
            dimension_semantics=("parallel",),          # megacore sharding on v7x
        ),
    )(x, w1_p, b1_p, w2_p, b2_p)

    return out


def init_params(key, in_features, p):
    """Mirror PyTorch nn.Linear default init: U[-1/sqrt(fan_in), 1/sqrt(fan_in)]."""
    k1, k2, k3, k4 = jax.random.split(key, 4)
    bound1 = 1.0 / jnp.sqrt(in_features)   # encoder fan_in = in_features
    bound2 = 1.0 / jnp.sqrt(p)             # decoder fan_in = p
    w1 = jax.random.uniform(k1, (in_features, p), jnp.float32, -bound1, bound1)
    b1 = jax.random.uniform(k2, (1, p), jnp.float32, -bound1, bound1)
    w2 = jax.random.uniform(k3, (p, in_features), jnp.float32, -bound2, bound2)
    b2 = jax.random.uniform(k4, (1, in_features), jnp.float32, -bound2, bound2)
    return w1, b1, w2, b2


def _reference(x, w1, b1, w2, b2):
    latent = jax.nn.sigmoid(x @ w1 + b1)
    return latent @ w2 + b2


if __name__ == "__main__":
    key = jax.random.PRNGKey(0)
    kx, kp, kx2 = jax.random.split(key, 3)

    in_features = 32
    p = 100  # module default hidden size (padded to 128 only for the weights)

    w1, b1, w2, b2 = init_params(kp, in_features, p)

    # --- small shape check (single grid step) ---
    batch = 8
    x = jax.random.normal(kx, (batch, in_features), jnp.float32)
    out = jax.block_until_ready(autoencoder_forward(x, w1, b1, w2, b2))
    ref = _reference(x, w1, b1, w2, b2)
    assert out.shape == (batch, in_features)
    assert jnp.allclose(out, ref, atol=1e-5, rtol=1e-5)

    # --- default tm: batch split into >= 2 grid steps (megacore path) ---
    batch2 = 300
    x2 = jax.random.normal(kx2, (batch2, in_features), jnp.float32)
    out2 = jax.block_until_ready(autoencoder_forward(x2, w1, b1, w2, b2))
    ref2 = _reference(x2, w1, b1, w2, b2)
    assert out2.shape == (batch2, in_features)
    assert jnp.allclose(out2, ref2, atol=1e-5, rtol=1e-5)

    # --- explicit small tile: exercises multiple grid steps + ragged last block ---
    out3 = jax.block_until_ready(autoencoder_forward(x2, w1, b1, w2, b2, tm=128))
    assert jnp.allclose(out3, ref2, atol=1e-5, rtol=1e-5)

    print("KERNEL_OK")
</pallas_src>

<mosaic_0001>
module attributes {stable_mosaic.version = 11 : i64} {
  func.func @autoencoder_kernel(%arg0: i32, %arg1: memref<8x32xf32, #tpu.memory_space<vmem>>, %arg2: memref<32x128xf32, #tpu.memory_space<vmem>>, %arg3: memref<1x128xf32, #tpu.memory_space<vmem>>, %arg4: memref<128x32xf32, #tpu.memory_space<vmem>>, %arg5: memref<1x32xf32, #tpu.memory_space<vmem>>, %arg6: memref<8x32xf32, #tpu.memory_space<vmem>>) attributes {dimension_semantics = [#tpu.dimension_semantics<parallel>], iteration_bounds = array<i64: 1>, scalar_prefetch = 0 : i64, scratch_operands = 0 : i64, tpu.core_type = #tpu.core_type<tc>, window_params = [{transform_indices = @transform_0, window_bounds = array<i64: 8, 32>}, {pipeline_mode = #tpu.pipeline_mode<synchronous>, transform_indices = @transform_1, window_bounds = array<i64: 32, 128>}, {pipeline_mode = #tpu.pipeline_mode<synchronous>, transform_indices = @transform_2, window_bounds = array<i64: 1, 128>}, {pipeline_mode = #tpu.pipeline_mode<synchronous>, transform_indices = @transform_3, window_bounds = array<i64: 128, 32>}, {pipeline_mode = #tpu.pipeline_mode<synchronous>, transform_indices = @transform_4, window_bounds = array<i64: 1, 32>}, {transform_indices = @transform_5, window_bounds = array<i64: 8, 32>}]} {
    %c0 = arith.constant 0 : index
    %c0_0 = arith.constant 0 : index
    %0 = vector.load %arg1[%c0, %c0_0] : memref<8x32xf32, #tpu.memory_space<vmem>>, vector<8x32xf32>
    %c0_1 = arith.constant 0 : index
    %c0_2 = arith.constant 0 : index
    %1 = vector.load %arg2[%c0_1, %c0_2] : memref<32x128xf32, #tpu.memory_space<vmem>>, vector<32x128xf32>
    %cst = arith.constant dense<0.000000e+00> : vector<8x128xf32>
    %2 = tpu.matmul %0, %1, %cst {dimension_numbers = #tpu.dot_dimension_numbers<[1], [0], [0], [1], [0, 0, 1, 1], [], []>, precision = #tpu.contract_precision<fp32>} : vector<8x32xf32>, vector<32x128xf32>, vector<8x128xf32> -> vector<8x128xf32>
    %c0_3 = arith.constant 0 : index
    %c0_4 = arith.constant 0 : index
    %3 = vector.load %arg3[%c0_3, %c0_4] : memref<1x128xf32, #tpu.memory_space<vmem>>, vector<1x128xf32>
    %4 = vector.broadcast %3 : vector<1x128xf32> to vector<8x128xf32>
    %5 = arith.addf %2, %4 : vector<8x128xf32>
    %6 = arith.negf %5 : vector<8x128xf32>
    %7 = math.exp %6 : vector<8x128xf32>
    %cst_5 = arith.constant 1.000000e+00 : f32
    %8 = vector.broadcast %cst_5 : f32 to vector<8x128xf32>
    %9 = arith.addf %8, %7 : vector<8x128xf32>
    %10 = arith.divf %8, %9 : vector<8x128xf32>
    %c0_6 = arith.constant 0 : index
    %c0_7 = arith.constant 0 : index
    %11 = vector.load %arg4[%c0_6, %c0_7] : memref<128x32xf32, #tpu.memory_space<vmem>>, vector<128x32xf32>
    %cst_8 = arith.constant dense<0.000000e+00> : vector<8x32xf32>
    %12 = tpu.matmul %10, %11, %cst_8 {dimension_numbers = #tpu.dot_dimension_numbers<[1], [0], [0], [1], [0, 0, 1, 1], [], []>, precision = #tpu.contract_precision<fp32>} : vector<8x128xf32>, vector<128x32xf32>, vector<8x32xf32> -> vector<8x32xf32>
    %c0_9 = arith.constant 0 : index
    %c0_10 = arith.constant 0 : index
    %13 = vector.load %arg5[%c0_9, %c0_10] : memref<1x32xf32, #tpu.memory_space<vmem>>, vector<1x32xf32>
    %14 = vector.broadcast %13 : vector<1x32xf32> to vector<8x32xf32>
    %15 = arith.addf %12, %14 : vector<8x32xf32>
    %c0_11 = arith.constant 0 : index
    %c0_12 = arith.constant 0 : index
    %16 = vector.load %arg6[%c0_11, %c0_12] : memref<8x32xf32, #tpu.memory_space<vmem>>, vector<8x32xf32>
    tpu.vector_store %arg6[%c0_11, %c0_12], %15 {strides = array<i32>} : memref<8x32xf32, #tpu.memory_space<vmem>>, vector<8x32xf32>,
    return
  }
  func.func @transform_0(%arg0: i32) -> (i32, i32) {
    %c0_i32 = arith.constant 0 : i32
    %c0_i32_0 = arith.constant 0 : i32
    return %arg0, %c0_i32 : i32, i32
  }
  func.func @transform_1(%arg0: i32) -> (i32, i32) {
    %c0_i32 = arith.constant 0 : i32
    %c0_i32_0 = arith.constant 0 : i32
    %c0_i32_1 = arith.constant 0 : i32
    return %c0_i32, %c0_i32_0 : i32, i32
  }
  func.func @transform_2(%arg0: i32) -> (i32, i32) {
    %c0_i32 = arith.constant 0 : i32
    %c0_i32_0 = arith.constant 0 : i32
    %c0_i32_1 = arith.constant 0 : i32
    return %c0_i32, %c0_i32_0 : i32, i32
  }
  func.func @transform_3(%arg0: i32) -> (i32, i32) {
    %c0_i32 = arith.constant 0 : i32
    %c0_i32_0 = arith.constant 0 : i32
    %c0_i32_1 = arith.constant 0 : i32
    return %c0_i32, %c0_i32_0 : i32, i32
  }
  func.func @transform_4(%arg0: i32) -> (i32, i32) {
    %c0_i32 = arith.constant 0 : i32
    %c0_i32_0 = arith.constant 0 : i32
    %c0_i32_1 = arith.constant 0 : i32
    return %c0_i32, %c0_i32_0 : i32, i32
  }
  func.func @transform_5(%arg0: i32) -> (i32, i32) {
    %c0_i32 = arith.constant 0 : i32
    %c0_i32_0 = arith.constant 0 : i32
    return %arg0, %c0_i32 : i32, i32
  }
}

</mosaic_0001>

<llo_original>
// kernel: autoencoder_forward.1
$region0: #{autoencoder_forward.1}
  #allocation0 [shape = 'u32[]', space=smem, size = 0x4, offset = 0x4, fixed_abs, tag = 'smem constant byte address 0x4 - core index']
  #allocation1 [shape = 'u32[144,128]{1,0:T(1,128)}', space=vmem, size = 0x12000, scoped, tag = 'internal scratch']
  %s0 = inlined_call_operand.vmem [shape: f32[8,32], index: 0, kind: input, shape index: {}]
  %s1 = inlined_call_operand.vmem [shape: f32[32,128], index: 1, kind: input, shape index: {}]
  %s2 = inlined_call_operand.vmem [shape: f32[1,128], index: 2, kind: input, shape index: {}]
  %s3 = inlined_call_operand.vmem [shape: f32[128,32], index: 3, kind: input, shape index: {}]
  %s4 = inlined_call_operand.vmem [shape: f32[1,32], index: 4, kind: input, shape index: {}]
  %s5 = inlined_call_operand.hbm [shape: f32[8,32], index: 5, kind: output, shape index: {}]
  %s6 = sld [smem:[#allocation0]]
  $region30: #{autoencoder_forward.1} parent=0
    _
  %s8 = ssub.s32 1, %s6
  %s9 = scalar_select 0, %s8, %s6
  $region1: #{autoencoder_forward.1} parent=0
    #allocation2 [shape = 'u8[4096]{0}', space=vmem, size = 0x1000, scoped, tag = 'output window, operand 0, single buffered']
    #allocation3 [shape = 's32[1]{0}', space=sflag, size = 0x4, scoped, tag = 'scoped memory for autoencoder_forward.1']
    %10 = vsyncpa [#allocation3], 0
    // Predicated region
    $region2: #{autoencoder_forward.1} parent=1 // pred_check
      _
    $region3: #{autoencoder_forward.1} parent=1 // pred_check_branch
      %12 = sbr.rel (0) target = $region5
    $region4: #{autoencoder_forward.1} parent=1 // pred_region
      _
    $region5: #{autoencoder_forward.1} parent=1 // pred_fallthru
      _
    // Predicated region
    $region6: #{autoencoder_forward.1} parent=1 // pred_check
      _
    $region7: #{autoencoder_forward.1} parent=1 // pred_check_branch
      %14 = sbr.rel (0) target = $region9
    $region8: #{autoencoder_forward.1} parent=1 // pred_region
      _
    $region9: #{autoencoder_forward.1} parent=1 // pred_fallthru
      _
    // Predicated region
    $region10: #{autoencoder_forward.1} parent=1 // pred_check
      _
    $region11: #{autoencoder_forward.1} parent=1 // pred_check_branch
      %16 = sbr.rel (0) target = $region13
    $region12: #{autoencoder_forward.1} parent=1 // pred_region
      _
    $region13: #{autoencoder_forward.1} parent=1 // pred_fallthru
      _
    // Predicated region
    $region14: #{autoencoder_forward.1} parent=1 // pred_check
      _
    $region15: #{autoencoder_forward.1} parent=1 // pred_check_branch
      %18 = sbr.rel (0) target = $region17
    $region16: #{autoencoder_forward.1} parent=1 // pred_region
      _
    $region17: #{autoencoder_forward.1} parent=1 // pred_fallthru
      _
    // Predicated region
    $region18: #{autoencoder_forward.1} parent=1 // pred_check
      _
    $region19: #{autoencoder_forward.1} parent=1 // pred_check_branch
      %20 = sbr.rel (0) target = $region21
    $region20: #{autoencoder_forward.1} parent=1 // pred_region
      _
    $region21: #{autoencoder_forward.1} parent=1 // pred_fallthru
      _
    %v21 = vld [vmem:[%s0] sm:$0xff]
    %v22 = vld [vmem:[%s1] sm:$0xff]
    %v23 = vld [vmem:[%s1 + $0x8] sm:$0xff]
    %v24 = vld [vmem:[%s1 + $0x10] sm:$0xff]
    %v25 = vld [vmem:[%s1 + $0x18] sm:$0xff]
    %v26 = vld [vmem:[%s2] sm:$0x1]
    %v28 = vlaneseq
    %v29 = vshrl.u32 %v28, 7
    %v30 = vsub.s32 0, %v29
    %v31 = vrot.slane %v26, %v30
    %vm33 = vcmask 261120
    %v35 = vsel %vm33, %v21, 0
    %37 = vmatprep.subr.mxu0 0.0
    %v38 = vand.u32 %v22, 4294901760
    %39 = vmatpush1.msra.mxu0 %v38
    %40 = vmatprep.subr.mxu0 0.0
    %v41 = vand.u32 %v23, 4294901760
    %42 = vmatpush1.msra.mxu0 %v41
    %43 = vmatprep.subr.mxu0 0.0
    %v44 = vand.u32 %v24, 4294901760
    %45 = vmatpush1.msra.mxu0 %v44
    %46 = vmatprep.subr.mxu0 0.0
    %v47 = vand.u32 %v25, 4294901760
    %48 = vmatpush1.msra.mxu0 %v47
    %49 = vmatprep.subr.mxu0 0.0
    %50 = vmatpush1.msra.mxu0 0.0
    %51 = vmatprep.subr.mxu0 0.0
    %52 = vmatpush1.msra.mxu0 0.0
    %53 = vmatprep.subr.mxu0 0.0
    %54 = vmatpush1.msra.mxu0 0.0
    %55 = vmatprep.subr.mxu0 0.0
    %56 = vmatpush1.msra.mxu0 0.0
    %57 = vmatprep.subr.mxu0 0.0
    %58 = vmatpush1.msra.mxu0 0.0
    %59 = vmatprep.subr.mxu0 0.0
    %60 = vmatpush1.msra.mxu0 0.0
    %61 = vmatprep.subr.mxu0 0.0
    %62 = vmatpush1.msra.mxu0 0.0
    %63 = vmatprep.subr.mxu0 0.0
    %64 = vmatpush1.msra.mxu0 0.0
    %65 = vmatprep.subr.mxu0 0.0
    %66 = vmatpush1.msra.mxu0 0.0
    %67 = vmatprep.subr.mxu0 0.0
    %68 = vmatpush1.msra.mxu0 0.0
    %69 = vmatprep.subr.mxu0 0.0
    %70 = vmatpush1.msra.mxu0 0.0
    %71 = vmatprep.subr.mxu0 0.0
    %72 = vmatpush1.msra.mxu0 0.0
    %73 = vmatprep.subr.mxu0 0.0
    %74 = vmatpush1.msra.mxu0 0.0
    %75 = vmatprep.subr.mxu0 0.0
    %76 = vmatpush1.msra.mxu0 0.0
    %77 = vmatprep.subr.mxu0 0.0
    %78 = vmatpush1.msra.mxu0 0.0
    %79 = vmatprep.subr.mxu0 0.0
    %80 = vmatpush1.msra.mxu0 0.0
    %81 = vmatprep.subr.mxu0 0.0
    %82 = vmatpush1.msra.mxu0 0.0
    %83 = vmatprep.subr.mxu0 0.0
    %84 = vmatpush1.msra.mxu0 0.0
    %85 = vmatprep.subr.mxu0 0.0
    %86 = vmatpush1.msra.mxu0 0.0
    %87 = vmatprep.subr.mxu0 0.0
    %88 = vmatpush1.msra.mxu0 0.0
    %89 = vmatprep.subr.mxu0 0.0
    %90 = vmatpush1.msra.mxu0 0.0
    %91 = vmatprep.subr.mxu0 0.0
    %92 = vmatpush1.msra.mxu0 0.0
    %93 = vmatprep.subr.mxu0 0.0
    %94 = vmatpush1.msra.mxu0 0.0
    %95 = vmatprep.subr.mxu0 0.0
    %96 = vmatpush1.msra.mxu0 0.0
    %97 = vmatprep.subr.mxu0 0.0
    %98 = vmatpush1.msra.mxu0 0.0
    %99 = vmatprep.subr.mxu0 0.0
    %100 = vmatpush1.msra.mxu0 0.0
    %101 = vmatprep.subr.mxu0 0.0
    %102 = vmatpush1.msra.mxu0 0.0
    %103 = vmatprep.subr.mxu0 0.0
    %104 = vmatpush1.msra.mxu0 0.0
    %105 = vmatprep.mubr.f32.mxu0 0.0
    %v106 = vand.u32 %v35, 4294901760
    %v107 = vsub.f32 %v35, %v106
    %v108 = vand.u32 %v107, 4294901760
    %v109 = vsub.f32 %v107, %v108
    %v110 = vand.u32 %v109, 4294901760
    %111 = vmatmul.mubr.f32.gmra.mrb[0].mxu0 %v110
    %v112 = vpop.f32.mrb[0].mxu0
    %v113 = vadd.f32 %v31, %v112
    %v114 = vpop.f32.mrb[0].mxu0
    %115 = vdwg.mxu0
    %116 = vmatprep.subr.mxu0 0.0
    %v117 = vand.u32 %v22, 4294901760
    %v118 = vsub.f32 %v22, %v117
    %v119 = vand.u32 %v118, 4294901760
    %v120 = vsub.f32 %v118, %v119
    %v121 = vand.u32 %v120, 4294901760
    %122 = vmatpush1.msra.mxu0 %v121
    %123 = vmatprep.subr.mxu0 0.0
    %v124 = vand.u32 %v23, 4294901760
    %v125 = vsub.f32 %v23, %v124
    %v126 = vand.u32 %v125, 4294901760
    %v127 = vsub.f32 %v125, %v126
    %v128 = vand.u32 %v127, 4294901760
    %129 = vmatpush1.msra.mxu0 %v128
    %130 = vmatprep.subr.mxu0 0.0
    %v131 = vand.u32 %v24, 4294901760
    %v132 = vsub.f32 %v24, %v131
    %v133 = vand.u32 %v132, 4294901760
    %v134 = vsub.f32 %v132, %v133
    %v135 = vand.u32 %v134, 4294901760
    %136 = vmatpush1.msra.mxu0 %v135
    %137 = vmatprep.subr.mxu0 0.0
    %v138 = vand.u32 %v25, 4294901760
    %v139 = vsub.f32 %v25, %v138
    %v140 = vand.u32 %v139, 4294901760
    %v141 = vsub.f32 %v139, %v140
    %v142 = vand.u32 %v141, 4294901760
    %143 = vmatpush1.msra.mxu0 %v142
    %144 = vmatprep.subr.mxu0 0.0
    %145 = vmatpush1.msra.mxu0 0.0
    %146 = vmatprep.subr.mxu0 0.0
    %147 = vmatpush1.msra.mxu0 0.0
    %148 = vmatprep.subr.mxu0 0.0
    %149 = vmatpush1.msra.mxu0 0.0
    %150 = vmatprep.subr.mxu0 0.0
    %151 = vmatpush1.msra.mxu0 0.0
    %152 = vmatprep.subr.mxu0 0.0
    %153 = vmatpush1.msra.mxu0 0.0
    %154 = vmatprep.subr.mxu0 0.0
    %155 = vmatpush1.msra.mxu0 0.0
    %156 = vmatprep.subr.mxu0 0.0
    %157 = vmatpush1.msra.mxu0 0.0
    %158 = vmatprep.subr.mxu0 0.0
    %159 = vmatpush1.msra.mxu0 0.0
    %160 = vmatprep.subr.mxu0 0.0
    %161 = vmatpush1.msra.mxu0 0.0
    %162 = vmatprep.subr.mxu0 0.0
    %163 = vmatpush1.msra.mxu0 0.0
    %164 = vmatprep.subr.mxu0 0.0
    %165 = vmatpush1.msra.mxu0 0.0
    %166 = vmatprep.subr.mxu0 0.0
    %167 = vmatpush1.msra.mxu0 0.0
    %168 = vmatprep.subr.mxu0 0.0
    %169 = vmatpush1.msra.mxu0 0.0
    %170 = vmatprep.subr.mxu0 0.0
    %171 = vmatpush1.msra.mxu0 0.0
    %172 = vmatprep.subr.mxu0 0.0
    %173 = vmatpush1.msra.mxu0 0.0
    %174 = vmatprep.subr.mxu0 0.0
    %175 = vmatpush1.msra.mxu0 0.0
    %176 = vmatprep.subr.mxu0 0.0
    %177 = vmatpush1.msra.mxu0 0.0
    %178 = vmatprep.subr.mxu0 0.0
    %179 = vmatpush1.msra.mxu0 0.0
    %180 = vmatprep.subr.mxu0 0.0
    %181 = vmatpush1.msra.mxu0 0.0
    %182 = vmatprep.subr.mxu0 0.0
    %183 = vmatpush1.msra.mxu0 0.0
    %184 = vmatprep.subr.mxu0 0.0
    %185 = vmatpush1.msra.mxu0 0.0
    %186 = vmatprep.subr.mxu0 0.0
    %187 = vmatpush1.msra.mxu0 0.0
    %188 = vmatprep.subr.mxu0 0.0
    %189 = vmatpush1.msra.mxu0 0.0
    %190 = vmatprep.subr.mxu0 0.0
    %191 = vmatpush1.msra.mxu0 0.0
    %192 = vmatprep.subr.mxu0 0.0
    %193 = vmatpush1.msra.mxu0 0.0
    %194 = vmatprep.subr.mxu0 0.0
    %195 = vmatpush1.msra.mxu0 0.0
    %196 = vmatprep.subr.mxu0 0.0
    %197 = vmatpush1.msra.mxu0 0.0
    %198 = vmatprep.subr.mxu0 0.0
    %199 = vmatpush1.msra.mxu0 0.0
    %200 = vmatprep.mubr.f32.mxu0 0.0
    %v201 = vand.u32 %v35, 4294901760
    %202 = vmatmul.mubr.f32.gmra.mrb[0].mxu0 %v201
    %v203 = vpop.f32.mrb[0].mxu0
    %v204 = vadd.f32 %v113, %v203
    %v205 = vpop.f32.mrb[0].mxu0
    %206 = vdwg.mxu0
    %207 = vmatprep.subr.mxu0 0.0
    %v208 = vand.u32 %v22, 4294901760
    %v209 = vsub.f32 %v22, %v208
    %210 = vmatpush1.msra.mxu0 %v209
    %211 = vmatprep.subr.mxu0 0.0
    %v212 = vand.u32 %v23, 4294901760
    %v213 = vsub.f32 %v23, %v212
    %214 = vmatpush1.msra.mxu0 %v213
    %215 = vmatprep.subr.mxu0 0.0
    %v216 = vand.u32 %v24, 4294901760
    %v217 = vsub.f32 %v24, %v216
    %218 = vmatpush1.msra.mxu0 %v217
    %219 = vmatprep.subr.mxu0 0.0
    %v220 = vand.u32 %v25, 4294901760
    %v221 = vsub.f32 %v25, %v220
    %222 = vmatpush1.msra.mxu0 %v221
    %223 = vmatprep.subr.mxu0 0.0
    %224 = vmatpush1.msra.mxu0 0.0
    %225 = vmatprep.subr.mxu0 0.0
    %226 = vmatpush1.msra.mxu0 0.0
    %227 = vmatprep.subr.mxu0 0.0
    %228 = vmatpush1.msra.mxu0 0.0
    %229 = vmatprep.subr.mxu0 0.0
    %230 = vmatpush1.msra.mxu0 0.0
    %231 = vmatprep.subr.mxu0 0.0
    %232 = vmatpush1.msra.mxu0 0.0
    %233 = vmatprep.subr.mxu0 0.0
    %234 = vmatpush1.msra.mxu0 0.0
    %235 = vmatprep.subr.mxu0 0.0
    %236 = vmatpush1.msra.mxu0 0.0
    %237 = vmatprep.subr.mxu0 0.0
    %238 = vmatpush1.msra.mxu0 0.0
    %239 = vmatprep.subr.mxu0 0.0
    %240 = vmatpush1.msra.mxu0 0.0
    %241 = vmatprep.subr.mxu0 0.0
    %242 = vmatpush1.msra.mxu0 0.0
    %243 = vmatprep.subr.mxu0 0.0
    %244 = vmatpush1.msra.mxu0 0.0
    %245 = vmatprep.subr.mxu0 0.0
    %246 = vmatpush1.msra.mxu0 0.0
    %247 = vmatprep.subr.mxu0 0.0
    %248 = vmatpush1.msra.mxu0 0.0
    %249 = vmatprep.subr.mxu0 0.0
    %250 = vmatpush1.msra.mxu0 0.0
    %251 = vmatprep.subr.mxu0 0.0
    %252 = vmatpush1.msra.mxu0 0.0
    %253 = vmatprep.subr.mxu0 0.0
    %254 = vmatpush1.msra.mxu0 0.0
    %255 = vmatprep.subr.mxu0 0.0
    %256 = vmatpush1.msra.mxu0 0.0
    %257 = vmatprep.subr.mxu0 0.0
    %258 = vmatpush1.msra.mxu0 0.0
    %259 = vmatprep.subr.mxu0 0.0
    %260 = vmatpush1.msra.mxu0 0.0
    %261 = vmatprep.subr.mxu0 0.0
    %262 = vmatpush1.msra.mxu0 0.0
    %263 = vmatprep.subr.mxu0 0.0
    %264 = vmatpush1.msra.mxu0 0.0
    %265 = vmatprep.subr.mxu0 0.0
    %266 = vmatpush1.msra.mxu0 0.0
    %267 = vmatprep.subr.mxu0 0.0
    %268 = vmatpush1.msra.mxu0 0.0
    %269 = vmatprep.subr.mxu0 0.0
    %270 = vmatpush1.msra.mxu0 0.0
    %271 = vmatprep.subr.mxu0 0.0
    %272 = vmatpush1.msra.mxu0 0.0
    %273 = vmatprep.subr.mxu0 0.0
    %274 = vmatpush1.msra.mxu0 0.0
    %275 = vmatprep.subr.mxu0 0.0
    %276 = vmatpush1.msra.mxu0 0.0
    %277 = vmatprep.subr.mxu0 0.0
    %278 = vmatpush1.msra.mxu0 0.0
    %279 = vmatprep.mubr.f32.mxu0 0.0
    %v280 = vand.u32 %v35, 4294901760
    %v281 = vsub.f32 %v35, %v280
    %282 = vmatmul.mubr.f32.gmra.mrb[0].mxu0 %v281
    %v283 = vpop.f32.mrb[0].mxu0
    %v284 = vadd.f32 %v204, %v283
    %v285 = vpop.f32.mrb[0].mxu0
    %286 = vdwg.mxu0
    %287 = vmatprep.subr.mxu0 0.0
    %v288 = vand.u32 %v22, 4294901760
    %289 = vmatpush1.msra.mxu0 %v288
    %290 = vmatprep.subr.mxu0 0.0
    %v291 = vand.u32 %v23, 4294901760
    %292 = vmatpush1.msra.mxu0 %v291
    %293 = vmatprep.subr.mxu0 0.0
    %v294 = vand.u32 %v24, 4294901760
    %295 = vmatpush1.msra.mxu0 %v294
    %296 = vmatprep.subr.mxu0 0.0
    %v297 = vand.u32 %v25, 4294901760
    %298 = vmatpush1.msra.mxu0 %v297
    %299 = vmatprep.subr.mxu0 0.0
    %300 = vmatpush1.msra.mxu0 0.0
    %301 = vmatprep.subr.mxu0 0.0
    %302 = vmatpush1.msra.mxu0 0.0
    %303 = vmatprep.subr.mxu0 0.0
    %304 = vmatpush1.msra.mxu0 0.0
    %305 = vmatprep.subr.mxu0 0.0
    %306 = vmatpush1.msra.mxu0 0.0
    %307 = vmatprep.subr.mxu0 0.0
    %308 = vmatpush1.msra.mxu0 0.0
    %309 = vmatprep.subr.mxu0 0.0
    %310 = vmatpush1.msra.mxu0 0.0
    %311 = vmatprep.subr.mxu0 0.0
    %312 = vmatpush1.msra.mxu0 0.0
    %313 = vmatprep.subr.mxu0 0.0
    %314 = vmatpush1.msra.mxu0 0.0
    %315 = vmatprep.subr.mxu0 0.0
    %316 = vmatpush1.msra.mxu0 0.0
    %317 = vmatprep.subr.mxu0 0.0
    %318 = vmatpush1.msra.mxu0 0.0
    %319 = vmatprep.subr.mxu0 0.0
    %320 = vmatpush1.msra.mxu0 0.0
    %321 = vmatprep.subr.mxu0 0.0
    %322 = vmatpush1.msra.mxu0 0.0
    %323 = vmatprep.subr.mxu0 0.0
    %324 = vmatpush1.msra.mxu0 0.0
    %325 = vmatprep.subr.mxu0 0.0
    %326 = vmatpush1.msra.mxu0 0.0
    %327 = vmatprep.subr.mxu0 0.0
    %328 = vmatpush1.msra.mxu0 0.0
    %329 = vmatprep.subr.mxu0 0.0
    %330 = vmatpush1.msra.mxu0 0.0
    %331 = vmatprep.subr.mxu0 0.0
    %332 = vmatpush1.msra.mxu0 0.0
    %333 = vmatprep.subr.mxu0 0.0
    %334 = vmatpush1.msra.mxu0 0.0
    %335 = vmatprep.subr.mxu0 0.0
    %336 = vmatpush1.msra.mxu0 0.0
    %337 = vmatprep.subr.mxu0 0.0
    %338 = vmatpush1.msra.mxu0 0.0
    %339 = vmatprep.subr.mxu0 0.0
    %340 = vmatpush1.msra.mxu0 0.0
    %341 = vmatprep.subr.mxu0 0.0
    %342 = vmatpush1.msra.mxu0 0.0
    %343 = vmatprep.subr.mxu0 0.0
    %344 = vmatpush1.msra.mxu0 0.0
    %345 = vmatprep.subr.mxu0 0.0
    %346 = vmatpush1.msra.mxu0 0.0
    %347 = vmatprep.subr.mxu0 0.0
    %348 = vmatpush1.msra.mxu0 0.0
    %349 = vmatprep.subr.mxu0 0.0
    %350 = vmatpush1.msra.mxu0 0.0
    %351 = vmatprep.subr.mxu0 0.0
    %352 = vmatpush1.msra.mxu0 0.0
    %353 = vmatprep.subr.mxu0 0.0
    %354 = vmatpush1.msra.mxu0 0.0
    %355 = vmatprep.mubr.f32.mxu0 0.0
    %v356 = vand.u32 %v35, 4294901760
    %v357 = vsub.f32 %v35, %v356
    %v358 = vand.u32 %v357, 4294901760
    %359 = vmatmul.mubr.f32.gmra.mrb[0].mxu0 %v358
    %v360 = vpop.f32.mrb[0].mxu0
    %v361 = vadd.f32 %v284, %v360
    %v362 = vpop.f32.mrb[0].mxu0
    %363 = vdwg.mxu0
    %364 = vmatprep.subr.mxu0 0.0
    %v365 = vand.u32 %v22, 4294901760
    %v366 = vsub.f32 %v22, %v365
    %v367 = vand.u32 %v366, 4294901760
    %368 = vmatpush1.msra.mxu0 %v367
    %369 = vmatprep.subr.mxu0 0.0
    %v370 = vand.u32 %v23, 4294901760
    %v371 = vsub.f32 %v23, %v370
    %v372 = vand.u32 %v371, 4294901760
    %373 = vmatpush1.msra.mxu0 %v372
    %374 = vmatprep.subr.mxu0 0.0
    %v375 = vand.u32 %v24, 4294901760
    %v376 = vsub.f32 %v24, %v375
    %v377 = vand.u32 %v376, 4294901760
    %378 = vmatpush1.msra.mxu0 %v377
    %379 = vmatprep.subr.mxu0 0.0
    %v380 = vand.u32 %v25, 4294901760
    %v381 = vsub.f32 %v25, %v380
    %v382 = vand.u32 %v381, 4294901760
    %383 = vmatpush1.msra.mxu0 %v382
    %384 = vmatprep.subr.mxu0 0.0
    %385 = vmatpush1.msra.mxu0 0.0
    %386 = vmatprep.subr.mxu0 0.0
    %387 = vmatpush1.msra.mxu0 0.0
    %388 = vmatprep.subr.mxu0 0.0
    %389 = vmatpush1.msra.mxu0 0.0
    %390 = vmatprep.subr.mxu0 0.0
    %391 = vmatpush1.msra.mxu0 0.0
    %392 = vmatprep.subr.mxu0 0.0
    %393 = vmatpush1.msra.mxu0 0.0
    %394 = vmatprep.subr.mxu0 0.0
    %395 = vmatpush1.msra.mxu0 0.0
    %396 = vmatprep.subr.mxu0 0.0
    %397 = vmatpush1.msra.mxu0 0.0
    %398 = vmatprep.subr.mxu0 0.0
    %399 = vmatpush1.msra.mxu0 0.0
    %400 = vmatprep.subr.mxu0 0.0
    %401 = vmatpush1.msra.mxu0 0.0
    %402 = vmatprep.subr.mxu0 0.0
    %403 = vmatpush1.msra.mxu0 0.0
    %404 = vmatprep.subr.mxu0 0.0
    %405 = vmatpush1.msra.mxu0 0.0
    %406 = vmatprep.subr.mxu0 0.0
    %407 = vmatpush1.msra.mxu0 0.0
    %408 = vmatprep.subr.mxu0 0.0
    %409 = vmatpush1.msra.mxu0 0.0
    %410 = vmatprep.subr.mxu0 0.0
    %411 = vmatpush1.msra.mxu0 0.0
    %412 = vmatprep.subr.mxu0 0.0
    %413 = vmatpush1.msra.mxu0 0.0
    %414 = vmatprep.subr.mxu0 0.0
    %415 = vmatpush1.msra.mxu0 0.0
    %416 = vmatprep.subr.mxu0 0.0
    %417 = vmatpush1.msra.mxu0 0.0
    %418 = vmatprep.subr.mxu0 0.0
    %419 = vmatpush1.msra.mxu0 0.0
    %420 = vmatprep.subr.mxu0 0.0
    %421 = vmatpush1.msra.mxu0 0.0
    %422 = vmatprep.subr.mxu0 0.0
    %423 = vmatpush1.msra.mxu0 0.0
    %424 = vmatprep.subr.mxu0 0.0
    %425 = vmatpush1.msra.mxu0 0.0
    %426 = vmatprep.subr.mxu0 0.0
    %427 = vmatpush1.msra.mxu0 0.0
    %428 = vmatprep.subr.mxu0 0.0
    %429 = vmatpush1.msra.mxu0 0.0
    %430 = vmatprep.subr.mxu0 0.0
    %431 = vmatpush1.msra.mxu0 0.0
    %432 = vmatprep.subr.mxu0 0.0
    %433 = vmatpush1.msra.mxu0 0.0
    %434 = vmatprep.subr.mxu0 0.0
    %435 = vmatpush1.msra.mxu0 0.0
    %436 = vmatprep.subr.mxu0 0.0
    %437 = vmatpush1.msra.mxu0 0.0
    %438 = vmatprep.subr.mxu0 0.0
    %439 = vmatpush1.msra.mxu0 0.0
    %440 = vmatprep.mubr.f32.mxu0 0.0
    %v441 = vand.u32 %v35, 4294901760
    %442 = vmatmul.mubr.f32.gmra.mrb[0].mxu0 %v441
    %v443 = vpop.f32.mrb[0].mxu0
    %v444 = vadd.f32 %v361, %v443
    %v445 = vpop.f32.mrb[0].mxu0
    %446 = vdwg.mxu0
    %447 = vmatprep.subr.mxu0 0.0
    %v448 = vand.u32 %v22, 4294901760
    %449 = vmatpush1.msra.mxu0 %v448
    %450 = vmatprep.subr.mxu0 0.0
    %v451 = vand.u32 %v23, 4294901760
    %452 = vmatpush1.msra.mxu0 %v451
    %453 = vmatprep.subr.mxu0 0.0
    %v454 = vand.u32 %v24, 4294901760
    %455 = vmatpush1.msra.mxu0 %v454
    %456 = vmatprep.subr.mxu0 0.0
    %v457 = vand.u32 %v25, 4294901760
    %458 = vmatpush1.msra.mxu0 %v457
    %459 = vmatprep.subr.mxu0 0.0
    %460 = vmatpush1.msra.mxu0 0.0
    %461 = vmatprep.subr.mxu0 0.0
    %462 = vmatpush1.msra.mxu0 0.0
    %463 = vmatprep.subr.mxu0 0.0
    %464 = vmatpush1.msra.mxu0 0.0
    %465 = vmatprep.subr.mxu0 0.0
    %466 = vmatpush1.msra.mxu0 0.0
    %467 = vmatprep.subr.mxu0 0.0
    %468 = vmatpush1.msra.mxu0 0.0
    %469 = vmatprep.subr.mxu0 0.0
    %470 = vmatpush1.msra.mxu0 0.0
    %471 = vmatprep.subr.mxu0 0.0
    %472 = vmatpush1.msra.mxu0 0.0
    %473 = vmatprep.subr.mxu0 0.0
    %474 = vmatpush1.msra.mxu0 0.0
    %475 = vmatprep.subr.mxu0 0.0
    %476 = vmatpush1.msra.mxu0 0.0
    %477 = vmatprep.subr.mxu0 0.0
    %478 = vmatpush1.msra.mxu0 0.0
    %479 = vmatprep.subr.mxu0 0.0
    %480 = vmatpush1.msra.mxu0 0.0
    %481 = vmatprep.subr.mxu0 0.0
    %482 = vmatpush1.msra.mxu0 0.0
    %483 = vmatprep.subr.mxu0 0.0
    %484 = vmatpush1.msra.mxu0 0.0
    %485 = vmatprep.subr.mxu0 0.0
    %486 = vmatpush1.msra.mxu0 0.0
    %487 = vmatprep.subr.mxu0 0.0
    %488 = vmatpush1.msra.mxu0 0.0
    %489 = vmatprep.subr.mxu0 0.0
    %490 = vmatpush1.msra.mxu0 0.0
    %491 = vmatprep.subr.mxu0 0.0
    %492 = vmatpush1.msra.mxu0 0.0
    %493 = vmatprep.subr.mxu0 0.0
    %494 = vmatpush1.msra.mxu0 0.0
    %495 = vmatprep.subr.mxu0 0.0
    %496 = vmatpush1.msra.mxu0 0.0
    %497 = vmatprep.subr.mxu0 0.0
    %498 = vmatpush1.msra.mxu0 0.0
    %499 = vmatprep.subr.mxu0 0.0
    %500 = vmatpush1.msra.mxu0 0.0
    %501 = vmatprep.subr.mxu0 0.0
    %502 = vmatpush1.msra.mxu0 0.0
    %503 = vmatprep.subr.mxu0 0.0
    %504 = vmatpush1.msra.mxu0 0.0
    %505 = vmatprep.subr.mxu0 0.0
    %506 = vmatpush1.msra.mxu0 0.0
    %507 = vmatprep.subr.mxu0 0.0
    %508 = vmatpush1.msra.mxu0 0.0
    %509 = vmatprep.subr.mxu0 0.0
    %510 = vmatpush1.msra.mxu0 0.0
    %511 = vmatprep.subr.mxu0 0.0
    %512 = vmatpush1.msra.mxu0 0.0
    %513 = vmatprep.subr.mxu0 0.0
    %514 = vmatpush1.msra.mxu0 0.0
    %515 = vmatprep.mubr.f32.mxu0 0.0
    %v516 = vand.u32 %v35, 4294901760
    %517 = vmatmul.mubr.f32.gmra.mrb[0].mxu0 %v516
    %v518 = vpop.f32.mrb[0].mxu0
    %v519 = vadd.f32 %v444, %v518
    %v520 = vpop.f32.mrb[0].mxu0
    %521 = vdwg.mxu0
    %v522 = vxor.u32 %v519, 2147483648
    %v523 = vmul.f32 %v522, 1.442695
    %v524 = vpow.pop %v523
    %v525 = vadd.f32 %v524, 1.0
    %v526 = vrcp.pop %v525
    %v527 = vmul.f32 1.0, %v526
    %v528 = vld [vmem:[%s3] sm:$0xff]
    %v529 = vld [vmem:[%s3 + $0x8] sm:$0xff]
    %v530 = vld [vmem:[%s3 + $0x10] sm:$0xff]
    %v531 = vld [vmem:[%s3 + $0x18] sm:$0xff]
    %v532 = vld [vmem:[%s3 + $0x20] sm:$0xff]
    %v533 = vld [vmem:[%s3 + $0x28] sm:$0xff]
    %v534 = vld [vmem:[%s3 + $0x30] sm:$0xff]
    %v535 = vld [vmem:[%s3 + $0x38] sm:$0xff]
    %v536 = vld [vmem:[%s3 + $0x40] sm:$0xff]
    %v537 = vld [vmem:[%s3 + $0x48] sm:$0xff]
    %v538 = vld [vmem:[%s3 + $0x50] sm:$0xff]
    %v539 = vld [vmem:[%s3 + $0x58] sm:$0xff]
    %v540 = vld [vmem:[%s3 + $0x60] sm:$0xff]
    %v541 = vld [vmem:[%s3 + $0x68] sm:$0xff]
    %v542 = vld [vmem:[%s3 + $0x70] sm:$0xff]
    %v543 = vld [vmem:[%s3 + $0x78] sm:$0xff]
    %v544 = vld [vmem:[%s4] sm:$0x1]
    %v546 = vlaneseq
    %v547 = vshrl.u32 %v546, 7
    %v548 = vsub.s32 0, %v547
    %v549 = vrot.slane %v544, %v548
    %551 = vmatprep.subr.mxu0 0.0
    %v552 = vand.u32 %v528, 4294901760
    %553 = vmatpush1.msra.mxu0 %v552
    %554 = vmatprep.subr.mxu0 0.0
    %v555 = vand.u32 %v529, 4294901760
    %556 = vmatpush1.msra.mxu0 %v555
    %557 = vmatprep.subr.mxu0 0.0
    %v558 = vand.u32 %v530, 4294901760
    %559 = vmatpush1.msra.mxu0 %v558
    %560 = vmatprep.subr.mxu0 0.0
    %v561 = vand.u32 %v531, 4294901760
    %562 = vmatpush1.msra.mxu0 %v561
    %563 = vmatprep.subr.mxu0 0.0
    %v564 = vand.u32 %v532, 4294901760
    %565 = vmatpush1.msra.mxu0 %v564
    %566 = vmatprep.subr.mxu0 0.0
    %v567 = vand.u32 %v533, 4294901760
    %568 = vmatpush1.msra.mxu0 %v567
    %569 = vmatprep.subr.mxu0 0.0
    %v570 = vand.u32 %v534, 4294901760
    %571 = vmatpush1.msra.mxu0 %v570
    %572 = vmatprep.subr.mxu0 0.0
    %v573 = vand.u32 %v535, 4294901760
    %574 = vmatpush1.msra.mxu0 %v573
    %575 = vmatprep.subr.mxu0 0.0
    %v576 = vand.u32 %v536, 4294901760
    %577 = vmatpush1.msra.mxu0 %v576
    %578 = vmatprep.subr.mxu0 0.0
    %v579 = vand.u32 %v537, 4294901760
    %580 = vmatpush1.msra.mxu0 %v579
    %581 = vmatprep.subr.mxu0 0.0
    %v582 = vand.u32 %v538, 4294901760
    %583 = vmatpush1.msra.mxu0 %v582
    %584 = vmatprep.subr.mxu0 0.0
    %v585 = vand.u32 %v539, 4294901760
    %586 = vmatpush1.msra.mxu0 %v585
    %587 = vmatprep.subr.mxu0 0.0
    %v588 = vand.u32 %v540, 4294901760
    %589 = vmatpush1.msra.mxu0 %v588
    %590 = vmatprep.subr.mxu0 0.0
    %v591 = vand.u32 %v541, 4294901760
    %592 = vmatpush1.msra.mxu0 %v591
    %593 = vmatprep.subr.mxu0 0.0
    %v594 = vand.u32 %v542, 4294901760
    %595 = vmatpush1.msra.mxu0 %v594
    %596 = vmatprep.subr.mxu0 0.0
    %v597 = vand.u32 %v543, 4294901760
    %598 = vmatpush1.msra.mxu0 %v597
    %599 = vmatprep.subr.mxu0 0.0
    %600 = vmatpush1.msra.mxu0 0.0
    %601 = vmatprep.subr.mxu0 0.0
    %602 = vmatpush1.msra.mxu0 0.0
    %603 = vmatprep.subr.mxu0 0.0
    %604 = vmatpush1.msra.mxu0 0.0
    %605 = vmatprep.subr.mxu0 0.0
    %606 = vmatpush1.msra.mxu0 0.0
    %607 = vmatprep.subr.mxu0 0.0
    %608 = vmatpush1.msra.mxu0 0.0
    %609 = vmatprep.subr.mxu0 0.0
    %610 = vmatpush1.msra.mxu0 0.0
    %611 = vmatprep.subr.mxu0 0.0
    %612 = vmatpush1.msra.mxu0 0.0
    %613 = vmatprep.subr.mxu0 0.0
    %614 = vmatpush1.msra.mxu0 0.0
    %615 = vmatprep.subr.mxu0 0.0
    %616 = vmatpush1.msra.mxu0 0.0
    %617 = vmatprep.subr.mxu0 0.0
    %618 = vmatpush1.msra.mxu0 0.0
    %619 = vmatprep.subr.mxu0 0.0
    %620 = vmatpush1.msra.mxu0 0.0
    %621 = vmatprep.subr.mxu0 0.0
    %622 = vmatpush1.msra.mxu0 0.0
    %623 = vmatprep.subr.mxu0 0.0
    %624 = vmatpush1.msra.mxu0 0.0
    %625 = vmatprep.subr.mxu0 0.0
    %626 = vmatpush1.msra.mxu0 0.0
    %627 = vmatprep.subr.mxu0 0.0
    %628 = vmatpush1.msra.mxu0 0.0
    %629 = vmatprep.subr.mxu0 0.0
    %630 = vmatpush1.msra.mxu0 0.0
    %631 = vmatprep.mubr.f32.mxu0 0.0
    %v632 = vand.u32 %v527, 4294901760
    %v633 = vsub.f32 %v527, %v632
    %v634 = vand.u32 %v633, 4294901760
    %v635 = vsub.f32 %v633, %v634
    %v636 = vand.u32 %v635, 4294901760
    %637 = vmatmul.mubr.f32.gmra.mrb[0].mxu0 %v636
    %v638 = vpop.f32.mrb[0].mxu0
    %v639 = vadd.f32 %v549, %v638
    %v640 = vpop.f32.mrb[0].mxu0
    %641 = vdwg.mxu0
    %642 = vmatprep.subr.mxu0 0.0
    %v643 = vand.u32 %v528, 4294901760
    %v644 = vsub.f32 %v528, %v643
    %v645 = vand.u32 %v644, 4294901760
    %v646 = vsub.f32 %v644, %v645
    %v647 = vand.u32 %v646, 4294901760
    %648 = vmatpush1.msra.mxu0 %v647
    %649 = vmatprep.subr.mxu0 0.0
    %v650 = vand.u32 %v529, 4294901760
    %v651 = vsub.f32 %v529, %v650
    %v652 = vand.u32 %v651, 4294901760
    %v653 = vsub.f32 %v651, %v652
    %v654 = vand.u32 %v653, 4294901760
    %655 = vmatpush1.msra.mxu0 %v654
    %656 = vmatprep.subr.mxu0 0.0
    %v657 = vand.u32 %v530, 4294901760
    %v658 = vsub.f32 %v530, %v657
    %v659 = vand.u32 %v658, 4294901760
    %v660 = vsub.f32 %v658, %v659
    %v661 = vand.u32 %v660, 4294901760
    %662 = vmatpush1.msra.mxu0 %v661
    %663 = vmatprep.subr.mxu0 0.0
    %v664 = vand.u32 %v531, 4294901760
    %v665 = vsub.f32 %v531, %v664
    %v666 = vand.u32 %v665, 4294901760
    %v667 = vsub.f32 %v665, %v666
    %v668 = vand.u32 %v667, 4294901760
    %669 = vmatpush1.msra.mxu0 %v668
    %670 = vmatprep.subr.mxu0 0.0
    %v671 = vand.u32 %v532, 4294901760
    %v672 = vsub.f32 %v532, %v671
    %v673 = vand.u32 %v672, 4294901760
    %v674 = vsub.f32 %v672, %v673
    %v675 = vand.u32 %v674, 4294901760
    %676 = vmatpush1.msra.mxu0 %v675
    %677 = vmatprep.subr.mxu0 0.0
    %v678 = vand.u32 %v533, 4294901760
    %v679 = vsub.f32 %v533, %v678
    %v680 = vand.u32 %v679, 4294901760
    %v681 = vsub.f32 %v679, %v680
    %v682 = vand.u32 %v681, 4294901760
    %683 = vmatpush1.msra.mxu0 %v682
    %684 = vmatprep.subr.mxu0 0.0
    %v685 = vand.u32 %v534, 4294901760
    %v686 = vsub.f32 %v534, %v685
    %v687 = vand.u32 %v686, 4294901760
    %v688 = vsub.f32 %v686, %v687
    %v689 = vand.u32 %v688, 4294901760
    %690 = vmatpush1.msra.mxu0 %v689
    %691 = vmatprep.subr.mxu0 0.0
    %v692 = vand.u32 %v535, 4294901760
    %v693 = vsub.f32 %v535, %v692
    %v694 = vand.u32 %v693, 4294901760
    %v695 = vsub.f32 %v693, %v694
    %v696 = vand.u32 %v695, 4294901760
    %697 = vmatpush1.msra.mxu0 %v696
    %698 = vmatprep.subr.mxu0 0.0
    %v699 = vand.u32 %v536, 4294901760
    %v700 = vsub.f32 %v536, %v699
    %v701 = vand.u32 %v700, 4294901760
    %v702 = vsub.f32 %v700, %v701
    %v703 = vand.u32 %v702, 4294901760
    %704 = vmatpush1.msra.mxu0 %v703
    %705 = vmatprep.subr.mxu0 0.0
    %v706 = vand.u32 %v537, 4294901760
    %v707 = vsub.f32 %v537, %v706
    %v708 = vand.u32 %v707, 4294901760
    %v709 = vsub.f32 %v707, %v708
    %v710 = vand.u32 %v709, 4294901760
    %711 = vmatpush1.msra.mxu0 %v710
    %712 = vmatprep.subr.mxu0 0.0
    %v713 = vand.u32 %v538, 4294901760
    %v714 = vsub.f32 %v538, %v713
    %v715 = vand.u32 %v714, 4294901760
    %v716 = vsub.f32 %v714, %v715
    %v717 = vand.u32 %v716, 4294901760
    %718 = vmatpush1.msra.mxu0 %v717
    %719 = vmatprep.subr.mxu0 0.0
    %v720 = vand.u32 %v539, 4294901760
    %v721 = vsub.f32 %v539, %v720
    %v722 = vand.u32 %v721, 4294901760
    %v723 = vsub.f32 %v721, %v722
    %v724 = vand.u32 %v723, 4294901760
    %725 = vmatpush1.msra.mxu0 %v724
    %726 = vmatprep.subr.mxu0 0.0
    %v727 = vand.u32 %v540, 4294901760
    %v728 = vsub.f32 %v540, %v727
    %v729 = vand.u32 %v728, 4294901760
    %v730 = vsub.f32 %v728, %v729
    %v731 = vand.u32 %v730, 4294901760
    %732 = vmatpush1.msra.mxu0 %v731
    %733 = vmatprep.subr.mxu0 0.0
    %v734 = vand.u32 %v541, 4294901760
    %v735 = vsub.f32 %v541, %v734
    %v736 = vand.u32 %v735, 4294901760
    %v737 = vsub.f32 %v735, %v736
    %v738 = vand.u32 %v737, 4294901760
    %739 = vmatpush1.msra.mxu0 %v738
    %740 = vmatprep.subr.mxu0 0.0
    %v741 = vand.u32 %v542, 4294901760
    %v742 = vsub.f32 %v542, %v741
    %v743 = vand.u32 %v742, 4294901760
    %v744 = vsub.f32 %v742, %v743
    %v745 = vand.u32 %v744, 4294901760
    %746 = vmatpush1.msra.mxu0 %v745
    %747 = vmatprep.subr.mxu0 0.0
    %v748 = vand.u32 %v543, 4294901760
    %v749 = vsub.f32 %v543, %v748
    %v750 = vand.u32 %v749, 4294901760
    %v751 = vsub.f32 %v749, %v750
    %v752 = vand.u32 %v751, 4294901760
    %753 = vmatpush1.msra.mxu0 %v752
    %754 = vmatprep.subr.mxu0 0.0
    %755 = vmatpush1.msra.mxu0 0.0
    %756 = vmatprep.subr.mxu0 0.0
    %757 = vmatpush1.msra.mxu0 0.0
    %758 = vmatprep.subr.mxu0 0.0
    %759 = vmatpush1.msra.mxu0 0.0
    %760 = vmatprep.subr.mxu0 0.0
    %761 = vmatpush1.msra.mxu0 0.0
    %762 = vmatprep.subr.mxu0 0.0
    %763 = vmatpush1.msra.mxu0 0.0
    %764 = vmatprep.subr.mxu0 0.0
    %765 = vmatpush1.msra.mxu0 0.0
    %766 = vmatprep.subr.mxu0 0.0
    %767 = vmatpush1.msra.mxu0 0.0
    %768 = vmatprep.subr.mxu0 0.0
    %769 = vmatpush1.msra.mxu0 0.0
    %770 = vmatprep.subr.mxu0 0.0
    %771 = vmatpush1.msra.mxu0 0.0
    %772 = vmatprep.subr.mxu0 0.0
    %773 = vmatpush1.msra.mxu0 0.0
    %774 = vmatprep.subr.mxu0 0.0
    %775 = vmatpush1.msra.mxu0 0.0
    %776 = vmatprep.subr.mxu0 0.0
    %777 = vmatpush1.msra.mxu0 0.0
    %778 = vmatprep.subr.mxu0 0.0
    %779 = vmatpush1.msra.mxu0 0.0
    %780 = vmatprep.subr.mxu0 0.0
    %781 = vmatpush1.msra.mxu0 0.0
    %782 = vmatprep.subr.mxu0 0.0
    %783 = vmatpush1.msra.mxu0 0.0
    %784 = vmatprep.subr.mxu0 0.0
    %785 = vmatpush1.msra.mxu0 0.0
    %786 = vmatprep.mubr.f32.mxu0 0.0
    %v787 = vand.u32 %v527, 4294901760
    %788 = vmatmul.mubr.f32.gmra.mrb[0].mxu0 %v787
    %v789 = vpop.f32.mrb[0].mxu0
    %v790 = vadd.f32 %v639, %v789
    %v791 = vpop.f32.mrb[0].mxu0
    %792 = vdwg.mxu0
    %793 = vmatprep.subr.mxu0 0.0
    %v794 = vand.u32 %v528, 4294901760
    %v795 = vsub.f32 %v528, %v794
    %796 = vmatpush1.msra.mxu0 %v795
    %797 = vmatprep.subr.mxu0 0.0
    %v798 = vand.u32 %v529, 4294901760
    %v799 = vsub.f32 %v529, %v798
    %800 = vmatpush1.msra.mxu0 %v799
    %801 = vmatprep.subr.mxu0 0.0
    %v802 = vand.u32 %v530, 4294901760
    %v803 = vsub.f32 %v530, %v802
    %804 = vmatpush1.msra.mxu0 %v803
    %805 = vmatprep.subr.mxu0 0.0
    %v806 = vand.u32 %v531, 4294901760
    %v807 = vsub.f32 %v531, %v806
    %808 = vmatpush1.msra.mxu0 %v807
    %809 = vmatprep.subr.mxu0 0.0
    %v810 = vand.u32 %v532, 4294901760
    %v811 = vsub.f32 %v532, %v810
    %812 = vmatpush1.msra.mxu0 %v811
    %813 = vmatprep.subr.mxu0 0.0
    %v814 = vand.u32 %v533, 4294901760
    %v815 = vsub.f32 %v533, %v814
    %816 = vmatpush1.msra.mxu0 %v815
    %817 = vmatprep.subr.mxu0 0.0
    %v818 = vand.u32 %v534, 4294901760
    %v819 = vsub.f32 %v534, %v818
    %820 = vmatpush1.msra.mxu0 %v819
    %821 = vmatprep.subr.mxu0 0.0
    %v822 = vand.u32 %v535, 4294901760
    %v823 = vsub.f32 %v535, %v822
    %824 = vmatpush1.msra.mxu0 %v823
    %825 = vmatprep.subr.mxu0 0.0
    %v826 = vand.u32 %v536, 4294901760
    %v827 = vsub.f32 %v536, %v826
    %828 = vmatpush1.msra.mxu0 %v827
    %829 = vmatprep.subr.mxu0 0.0
    %v830 = vand.u32 %v537, 4294901760
    %v831 = vsub.f32 %v537, %v830
    %832 = vmatpush1.msra.mxu0 %v831
    %833 = vmatprep.subr.mxu0 0.0
    %v834 = vand.u32 %v538, 4294901760
    %v835 = vsub.f32 %v538, %v834
    %836 = vmatpush1.msra.mxu0 %v835
    %837 = vmatprep.subr.mxu0 0.0
    %v838 = vand.u32 %v539, 4294901760
    %v839 = vsub.f32 %v539, %v838
    %840 = vmatpush1.msra.mxu0 %v839
    %841 = vmatprep.subr.mxu0 0.0
    %v842 = vand.u32 %v540, 4294901760
    %v843 = vsub.f32 %v540, %v842
    %844 = vmatpush1.msra.mxu0 %v843
    %845 = vmatprep.subr.mxu0 0.0
    %v846 = vand.u32 %v541, 4294901760
    %v847 = vsub.f32 %v541, %v846
    %848 = vmatpush1.msra.mxu0 %v847
    %849 = vmatprep.subr.mxu0 0.0
    %v850 = vand.u32 %v542, 4294901760
    %v851 = vsub.f32 %v542, %v850
    %852 = vmatpush1.msra.mxu0 %v851
    %853 = vmatprep.subr.mxu0 0.0
    %v854 = vand.u32 %v543, 4294901760
    %v855 = vsub.f32 %v543, %v854
    %856 = vmatpush1.msra.mxu0 %v855
    %857 = vmatprep.subr.mxu0 0.0
    %858 = vmatpush1.msra.mxu0 0.0
    %859 = vmatprep.subr.mxu0 0.0
    %860 = vmatpush1.msra.mxu0 0.0
    %861 = vmatprep.subr.mxu0 0.0
    %862 = vmatpush1.msra.mxu0 0.0
    %863 = vmatprep.subr.mxu0 0.0
    %864 = vmatpush1.msra.mxu0 0.0
    %865 = vmatprep.subr.mxu0 0.0
    %866 = vmatpush1.msra.mxu0 0.0
    %867 = vmatprep.subr.mxu0 0.0
    %868 = vmatpush1.msra.mxu0 0.0
    %869 = vmatprep.subr.mxu0 0.0
    %870 = vmatpush1.msra.mxu0 0.0
    %871 = vmatprep.subr.mxu0 0.0
    %872 = vmatpush1.msra.mxu0 0.0
    %873 = vmatprep.subr.mxu0 0.0
    %874 = vmatpush1.msra.mxu0 0.0
    %875 = vmatprep.subr.mxu0 0.0
    %876 = vmatpush1.msra.mxu0 0.0
    %877 = vmatprep.subr.mxu0 0.0
    %878 = vmatpush1.msra.mxu0 0.0
    %879 = vmatprep.subr.mxu0 0.0
    %880 = vmatpush1.msra.mxu0 0.0
    %881 = vmatprep.subr.mxu0 0.0
    %882 = vmatpush1.msra.mxu0 0.0
    %883 = vmatprep.subr.mxu0 0.0
    %884 = vmatpush1.msra.mxu0 0.0
    %885 = vmatprep.subr.mxu0 0.0
    %886 = vmatpush1.msra.mxu0 0.0
    %887 = vmatprep.subr.mxu0 0.0
    %888 = vmatpush1.msra.mxu0 0.0
    %889 = vmatprep.mubr.f32.mxu0 0.0
    %v890 = vand.u32 %v527, 4294901760
    %v891 = vsub.f32 %v527, %v890
    %892 = vmatmul.mubr.f32.gmra.mrb[0].mxu0 %v891
    %v893 = vpop.f32.mrb[0].mxu0
    %v894 = vadd.f32 %v790, %v893
    %v895 = vpop.f32.mrb[0].mxu0
    %896 = vdwg.mxu0
    %897 = vmatprep.subr.mxu0 0.0
    %v898 = vand.u32 %v528, 4294901760
    %899 = vmatpush1.msra.mxu0 %v898
    %900 = vmatprep.subr.mxu0 0.0
    %v901 = vand.u32 %v529, 4294901760
    %902 = vmatpush1.msra.mxu0 %v901
    %903 = vmatprep.subr.mxu0 0.0
    %v904 = vand.u32 %v530, 4294901760
    %905 = vmatpush1.msra.mxu0 %v904
    %906 = vmatprep.subr.mxu0 0.0
    %v907 = vand.u32 %v531, 4294901760
    %908 = vmatpush1.msra.mxu0 %v907
    %909 = vmatprep.subr.mxu0 0.0
    %v910 = vand.u32 %v532, 4294901760
    %911 = vmatpush1.msra.mxu0 %v910
    %912 = vmatprep.subr.mxu0 0.0
    %v913 = vand.u32 %v533, 4294901760
    %914 = vmatpush1.msra.mxu0 %v913
    %915 = vmatprep.subr.mxu0 0.0
    %v916 = vand.u32 %v534, 4294901760
    %917 = vmatpush1.msra.mxu0 %v916
    %918 = vmatprep.subr.mxu0 0.0
    %v919 = vand.u32 %v535, 4294901760
    %920 = vmatpush1.msra.mxu0 %v919
    %921 = vmatprep.subr.mxu0 0.0
    %v922 = vand.u32 %v536, 4294901760
    %923 = vmatpush1.msra.mxu0 %v922
    %924 = vmatprep.subr.mxu0 0.0
    %v925 = vand.u32 %v537, 4294901760
    %926 = vmatpush1.msra.mxu0 %v925
    %927 = vmatprep.subr.mxu0 0.0
    %v928 = vand.u32 %v538, 4294901760
    %929 = vmatpush1.msra.mxu0 %v928
    %930 = vmatprep.subr.mxu0 0.0
    %v931 = vand.u32 %v539, 4294901760
    %932 = vmatpush1.msra.mxu0 %v931
    %933 = vmatprep.subr.mxu0 0.0
    %v934 = vand.u32 %v540, 4294901760
    %935 = vmatpush1.msra.mxu0 %v934
    %936 = vmatprep.subr.mxu0 0.0
    %v937 = vand.u32 %v541, 4294901760
    %938 = vmatpush1.msra.mxu0 %v937
    %939 = vmatprep.subr.mxu0 0.0
    %v940 = vand.u32 %v542, 4294901760
    %941 = vmatpush1.msra.mxu0 %v940
    %942 = vmatprep.subr.mxu0 0.0
    %v943 = vand.u32 %v543, 4294901760
    %944 = vmatpush1.msra.mxu0 %v943
    %945 = vmatprep.subr.mxu0 0.0
    %946 = vmatpush1.msra.mxu0 0.0
    %947 = vmatprep.subr.mxu0 0.0
    %948 = vmatpush1.msra.mxu0 0.0
    %949 = vmatprep.subr.mxu0 0.0
    %950 = vmatpush1.msra.mxu0 0.0
    %951 = vmatprep.subr.mxu0 0.0
    %952 = vmatpush1.msra.mxu0 0.0
    %953 = vmatprep.subr.mxu0 0.0
    %954 = vmatpush1.msra.mxu0 0.0
    %955 = vmatprep.subr.mxu0 0.0
    %956 = vmatpush1.msra.mxu0 0.0
    %957 = vmatprep.subr.mxu0 0.0
    %958 = vmatpush1.msra.mxu0 0.0
    %959 = vmatprep.subr.mxu0 0.0
    %960 = vmatpush1.msra.mxu0 0.0
    %961 = vmatprep.subr.mxu0 0.0
    %962 = vmatpush1.msra.mxu0 0.0
    %963 = vmatprep.subr.mxu0 0.0
    %964 = vmatpush1.msra.mxu0 0.0
    %965 = vmatprep.subr.mxu0 0.0
    %966 = vmatpush1.msra.mxu0 0.0
    %967 = vmatprep.subr.mxu0 0.0
    %968 = vmatpush1.msra.mxu0 0.0
    %969 = vmatprep.subr.mxu0 0.0
    %970 = vmatpush1.msra.mxu0 0.0
    %971 = vmatprep.subr.mxu0 0.0
    %972 = vmatpush1.msra.mxu0 0.0
    %973 = vmatprep.subr.mxu0 0.0
    %974 = vmatpush1.msra.mxu0 0.0
    %975 = vmatprep.subr.mxu0 0.0
    %976 = vmatpush1.msra.mxu0 0.0
    %977 = vmatprep.mubr.f32.mxu0 0.0
    %v978 = vand.u32 %v527, 4294901760
    %v979 = vsub.f32 %v527, %v978
    %v980 = vand.u32 %v979, 4294901760
    %981 = vmatmul.mubr.f32.gmra.mrb[0].mxu0 %v980
    %v982 = vpop.f32.mrb[0].mxu0
    %v983 = vadd.f32 %v894, %v982
    %v984 = vpop.f32.mrb[0].mxu0
    %985 = vdwg.mxu0
    %986 = vmatprep.subr.mxu0 0.0
    %v987 = vand.u32 %v528, 4294901760
    %v988 = vsub.f32 %v528, %v987
    %v989 = vand.u32 %v988, 4294901760
    %990 = vmatpush1.msra.mxu0 %v989
    %991 = vmatprep.subr.mxu0 0.0
    %v992 = vand.u32 %v529, 4294901760
    %v993 = vsub.f32 %v529, %v992
    %v994 = vand.u32 %v993, 4294901760
    %995 = vmatpush1.msra.mxu0 %v994
    %996 = vmatprep.subr.mxu0 0.0
    %v997 = vand.u32 %v530, 4294901760
    %v998 = vsub.f32 %v530, %v997
    %v999 = vand.u32 %v998, 4294901760
    %1000 = vmatpush1.msra.mxu0 %v999
    %1001 = vmatprep.subr.mxu0 0.0
    %v1002 = vand.u32 %v531, 4294901760
    %v1003 = vsub.f32 %v531, %v1002
    %v1004 = vand.u32 %v1003, 4294901760
    %1005 = vmatpush1.msra.mxu0 %v1004
    %1006 = vmatprep.subr.mxu0 0.0
    %v1007 = vand.u32 %v532, 4294901760
    %v1008 = vsub.f32 %v532, %v1007
    %v1009 = vand.u32 %v1008, 4294901760
    %1010 = vmatpush1.msra.mxu0 %v1009
    %1011 = vmatprep.subr.mxu0 0.0
    %v1012 = vand.u32 %v533, 4294901760
    %v1013 = vsub.f32 %v533, %v1012
    %v1014 = vand.u32 %v1013, 4294901760
    %1015 = vmatpush1.msra.mxu0 %v1014
    %1016 = vmatprep.subr.mxu0 0.0
    %v1017 = vand.u32 %v534, 4294901760
    %v1018 = vsub.f32 %v534, %v1017
    %v1019 = vand.u32 %v1018, 4294901760
    %1020 = vmatpush1.msra.mxu0 %v1019
    %1021 = vmatprep.subr.mxu0 0.0
    %v1022 = vand.u32 %v535, 4294901760
    %v1023 = vsub.f32 %v535, %v1022
    %v1024 = vand.u32 %v1023, 4294901760
    %1025 = vmatpush1.msra.mxu0 %v1024
    %1026 = vmatprep.subr.mxu0 0.0
    %v1027 = vand.u32 %v536, 4294901760
    %v1028 = vsub.f32 %v536, %v1027
    %v1029 = vand.u32 %v1028, 4294901760
    %1030 = vmatpush1.msra.mxu0 %v1029
    %1031 = vmatprep.subr.mxu0 0.0
    %v1032 = vand.u32 %v537, 4294901760
    %v1033 = vsub.f32 %v537, %v1032
    %v1034 = vand.u32 %v1033, 4294901760
    %1035 = vmatpush1.msra.mxu0 %v1034
    %1036 = vmatprep.subr.mxu0 0.0
    %v1037 = vand.u32 %v538, 4294901760
    %v1038 = vsub.f32 %v538, %v1037
    %v1039 = vand.u32 %v1038, 4294901760
    %1040 = vmatpush1.msra.mxu0 %v1039
    %1041 = vmatprep.subr.mxu0 0.0
    %v1042 = vand.u32 %v539, 4294901760
    %v1043 = vsub.f32 %v539, %v1042
    %v1044 = vand.u32 %v1043, 4294901760
    %1045 = vmatpush1.msra.mxu0 %v1044
    %1046 = vmatprep.subr.mxu0 0.0
    %v1047 = vand.u32 %v540, 4294901760
    %v1048 = vsub.f32 %v540, %v1047
    %v1049 = vand.u32 %v1048, 4294901760
    %1050 = vmatpush1.msra.mxu0 %v1049
    %1051 = vmatprep.subr.mxu0 0.0
    %v1052 = vand.u32 %v541, 4294901760
    %v1053 = vsub.f32 %v541, %v1052
    %v1054 = vand.u32 %v1053, 4294901760
    %1055 = vmatpush1.msra.mxu0 %v1054
    %1056 = vmatprep.subr.mxu0 0.0
    %v1057 = vand.u32 %v542, 4294901760
    %v1058 = vsub.f32 %v542, %v1057
    %v1059 = vand.u32 %v1058, 4294901760
    %1060 = vmatpush1.msra.mxu0 %v1059
    %1061 = vmatprep.subr.mxu0 0.0
    %v1062 = vand.u32 %v543, 4294901760
    %v1063 = vsub.f32 %v543, %v1062
    %v1064 = vand.u32 %v1063, 4294901760
    %1065 = vmatpush1.msra.mxu0 %v1064
    %1066 = vmatprep.subr.mxu0 0.0
    %1067 = vmatpush1.msra.mxu0 0.0
    %1068 = vmatprep.subr.mxu0 0.0
    %1069 = vmatpush1.msra.mxu0 0.0
    %1070 = vmatprep.subr.mxu0 0.0
    %1071 = vmatpush1.msra.mxu0 0.0
    %1072 = vmatprep.subr.mxu0 0.0
    %1073 = vmatpush1.msra.mxu0 0.0
    %1074 = vmatprep.subr.mxu0 0.0
    %1075 = vmatpush1.msra.mxu0 0.0
    %1076 = vmatprep.subr.mxu0 0.0
    %1077 = vmatpush1.msra.mxu0 0.0
    %1078 = vmatprep.subr.mxu0 0.0
    %1079 = vmatpush1.msra.mxu0 0.0
    %1080 = vmatprep.subr.mxu0 0.0
    %1081 = vmatpush1.msra.mxu0 0.0
    %1082 = vmatprep.subr.mxu0 0.0
    %1083 = vmatpush1.msra.mxu0 0.0
    %1084 = vmatprep.subr.mxu0 0.0
    %1085 = vmatpush1.msra.mxu0 0.0
    %1086 = vmatprep.subr.mxu0 0.0
    %1087 = vmatpush1.msra.mxu0 0.0
    %1088 = vmatprep.subr.mxu0 0.0
    %1089 = vmatpush1.msra.mxu0 0.0
    %1090 = vmatprep.subr.mxu0 0.0
    %1091 = vmatpush1.msra.mxu0 0.0
    %1092 = vmatprep.subr.mxu0 0.0
    %1093 = vmatpush1.msra.mxu0 0.0
    %1094 = vmatprep.subr.mxu0 0.0
    %1095 = vmatpush1.msra.mxu0 0.0
    %1096 = vmatprep.subr.mxu0 0.0
    %1097 = vmatpush1.msra.mxu0 0.0
    %1098 = vmatprep.mubr.f32.mxu0 0.0
    %v1099 = vand.u32 %v527, 4294901760
    %1100 = vmatmul.mubr.f32.gmra.mrb[0].mxu0 %v1099
    %v1101 = vpop.f32.mrb[0].mxu0
    %v1102 = vadd.f32 %v983, %v1101
    %v1103 = vpop.f32.mrb[0].mxu0
    %1104 = vdwg.mxu0
    %1105 = vmatprep.subr.mxu0 0.0
    %v1106 = vand.u32 %v528, 4294901760
    %1107 = vmatpush1.msra.mxu0 %v1106
    %1108 = vmatprep.subr.mxu0 0.0
    %v1109 = vand.u32 %v529, 4294901760
    %1110 = vmatpush1.msra.mxu0 %v1109
    %1111 = vmatprep.subr.mxu0 0.0
    %v1112 = vand.u32 %v530, 4294901760
    %1113 = vmatpush1.msra.mxu0 %v1112
    %1114 = vmatprep.subr.mxu0 0.0
    %v1115 = vand.u32 %v531, 4294901760
    %1116 = vmatpush1.msra.mxu0 %v1115
    %1117 = vmatprep.subr.mxu0 0.0
    %v1118 = vand.u32 %v532, 4294901760
    %1119 = vmatpush1.msra.mxu0 %v1118
    %1120 = vmatprep.subr.mxu0 0.0
    %v1121 = vand.u32 %v533, 4294901760
    %1122 = vmatpush1.msra.mxu0 %v1121
    %1123 = vmatprep.subr.mxu0 0.0
    %v1124 = vand.u32 %v534, 4294901760
    %1125 = vmatpush1.msra.mxu0 %v1124
    %1126 = vmatprep.subr.mxu0 0.0
    %v1127 = vand.u32 %v535, 4294901760
    %1128 = vmatpush1.msra.mxu0 %v1127
    %1129 = vmatprep.subr.mxu0 0.0
    %v1130 = vand.u32 %v536, 4294901760
    %1131 = vmatpush1.msra.mxu0 %v1130
    %1132 = vmatprep.subr.mxu0 0.0
    %v1133 = vand.u32 %v537, 4294901760
    %1134 = vmatpush1.msra.mxu0 %v1133
    %1135 = vmatprep.subr.mxu0 0.0
    %v1136 = vand.u32 %v538, 4294901760
    %1137 = vmatpush1.msra.mxu0 %v1136
    %1138 = vmatprep.subr.mxu0 0.0
    %v1139 = vand.u32 %v539, 4294901760
    %1140 = vmatpush1.msra.mxu0 %v1139
    %1141 = vmatprep.subr.mxu0 0.0
    %v1142 = vand.u32 %v540, 4294901760
    %1143 = vmatpush1.msra.mxu0 %v1142
    %1144 = vmatprep.subr.mxu0 0.0
    %v1145 = vand.u32 %v541, 4294901760
    %1146 = vmatpush1.msra.mxu0 %v1145
    %1147 = vmatprep.subr.mxu0 0.0
    %v1148 = vand.u32 %v542, 4294901760
    %1149 = vmatpush1.msra.mxu0 %v1148
    %1150 = vmatprep.subr.mxu0 0.0
    %v1151 = vand.u32 %v543, 4294901760
    %1152 = vmatpush1.msra.mxu0 %v1151
    %1153 = vmatprep.subr.mxu0 0.0
    %1154 = vmatpush1.msra.mxu0 0.0
    %1155 = vmatprep.subr.mxu0 0.0
    %1156 = vmatpush1.msra.mxu0 0.0
    %1157 = vmatprep.subr.mxu0 0.0
    %1158 = vmatpush1.msra.mxu0 0.0
    %1159 = vmatprep.subr.mxu0 0.0
    %1160 = vmatpush1.msra.mxu0 0.0
    %1161 = vmatprep.subr.mxu0 0.0
    %1162 = vmatpush1.msra.mxu0 0.0
    %1163 = vmatprep.subr.mxu0 0.0
    %1164 = vmatpush1.msra.mxu0 0.0
    %1165 = vmatprep.subr.mxu0 0.0
    %1166 = vmatpush1.msra.mxu0 0.0
    %1167 = vmatprep.subr.mxu0 0.0
    %1168 = vmatpush1.msra.mxu0 0.0
    %1169 = vmatprep.subr.mxu0 0.0
    %1170 = vmatpush1.msra.mxu0 0.0
    %1171 = vmatprep.subr.mxu0 0.0
    %1172 = vmatpush1.msra.mxu0 0.0
    %1173 = vmatprep.subr.mxu0 0.0
    %1174 = vmatpush1.msra.mxu0 0.0
    %1175 = vmatprep.subr.mxu0 0.0
    %1176 = vmatpush1.msra.mxu0 0.0
    %1177 = vmatprep.subr.mxu0 0.0
    %1178 = vmatpush1.msra.mxu0 0.0
    %1179 = vmatprep.subr.mxu0 0.0
    %1180 = vmatpush1.msra.mxu0 0.0
    %1181 = vmatprep.subr.mxu0 0.0
    %1182 = vmatpush1.msra.mxu0 0.0
    %1183 = vmatprep.subr.mxu0 0.0
    %1184 = vmatpush1.msra.mxu0 0.0
    %1185 = vmatprep.mubr.f32.mxu0 0.0
    %v1186 = vand.u32 %v527, 4294901760
    %1187 = vmatmul.mubr.f32.gmra.mrb[0].mxu0 %v1186
    %v1188 = vpop.f32.mrb[0].mxu0
    %v1189 = vadd.f32 %v1102, %v1188
    %v1190 = vpop.f32.mrb[0].mxu0
    %1191 = vdwg.mxu0
    %1192 = vst.msk [vmem:[#allocation2] sm:$0xff] %vm33, %v1189
    // Predicated region
    $region22: #{autoencoder_forward.1} parent=1 // pred_check
      _
    $region23: #{autoencoder_forward.1} parent=1 // pred_check_branch
      %1194 = sbr.rel (0) target = $region25
    $region24: #{autoencoder_forward.1} parent=1 // pred_region
      %s1196 = ssub.s32 128, 128
      %1197 = vsyncadd [#allocation3], %s1196
      %s1199 = sshll.u32 [#allocation2], 4
      %s1200 = int_to_ptr.vmem [resolvable:$true] %s1199
      %1202 = dma.vmem_to_hbm [thread:$0]  %s1200, 128, %s5, [#allocation3]
    $region25: #{autoencoder_forward.1} parent=1 // pred_fallthru
      _
    // Predicated region
    $region26: #{autoencoder_forward.1} parent=1 // pred_check
      _
    $region27: #{autoencoder_forward.1} parent=1 // pred_check_branch
      %1204 = sbr.rel (0) target = $region29
    $region28: #{autoencoder_forward.1} parent=1 // pred_region
      %1205 = dma.done [#allocation3], 128
    $region29: #{autoencoder_forward.1} parent=1 // pred_fallthru
      _
    %1206 = vsyncpa [#allocation3], 1

</llo_original>
